<compile_context>
chip_gen: v6e
topology: v6e:2x2x1
jax: 0.10.0
libtpu: 0.0.40
codegen_flags: <defaults>
</compile_context>

<pallas_src>
import jax
import jax.numpy as jnp
from jax.experimental import pallas as pl
from jax.experimental.pallas import tpu as pltpu

HIDDEN_DIM = 64
N_ACTIONS = 5
USE_RNN = False  # matches args['use_rnn']
OUT_WIDTH = 2 * HIDDEN_DIM  # 128-lane-dense output slab: [h | q_padded]


def _round_up(x, m):
    return ((x + m - 1) // m) * m


def rnn_agent_kernel(x_ref, w1_ref, b1_ref, w2_ref, b2_ref, w3_ref, b3_ref,
                     out_ref):
    # Biases are grid-invariant; load once per tile in f32.
    b1 = b1_ref[...]
    b2 = b2_ref[...]
    b3 = b3_ref[...]

    # fc1 + relu  (bf16 x bf16 -> f32 accumulate on MXU)
    h1 = jnp.dot(x_ref[...], w1_ref[...],
                 preferred_element_type=jnp.float32) + b1
    h1 = jnp.maximum(h1, 0.0)

    # "rnn" == Linear(hidden, hidden) + relu  (use_rnn=False branch)
    h2 = jnp.dot(h1.astype(w2_ref.dtype), w2_ref[...],
                 preferred_element_type=jnp.float32) + b2
    h2 = jnp.maximum(h2, 0.0)

    # fc2 (no activation); W3/b3 are zero-padded to HIDDEN_DIM output cols so the
    # store stays lane-dense.
    q = jnp.dot(h2.astype(w3_ref.dtype), w3_ref[...],
                preferred_element_type=jnp.float32) + b3

    # Single 128-wide output slab: [h (64) | q_padded (64)]
    out_ref[...] = jnp.concatenate([h2, q], axis=-1).astype(out_ref.dtype)


def rnn_agent_forward(inputs, hidden_state, params, *, tile_b=1024,
                      compute_dtype=jnp.bfloat16):
    """inputs: [B, input_shape]; hidden_state: [B, hidden] (unused when use_rnn=False)."""
    # hidden_state.reshape(-1, hidden_dim) — semantically a no-op in this branch.
    _ = hidden_state.reshape(-1, HIDDEN_DIM)
    # TODO(synk): GRUCell path (use_rnn=True) not implemented; config uses use_rnn=False.

    w1, b1, w2, b2, w3, b3 = params
    B, F_in = inputs.shape
    H = HIDDEN_DIM

    # Pad fc2 weights/bias to a full 64-wide (lane-friendly) output block.
    w3p = jnp.zeros((H, H), w3.dtype).at[:, :N_ACTIONS].set(w3)
    b3p = jnp.zeros((1, H), b3.dtype).at[:, :N_ACTIONS].set(b3)

    # bf16 inputs/weights (f32 accumulation inside the kernel); biases stay f32.
    x = inputs.astype(compute_dtype)
    w1c = w1.astype(compute_dtype)
    w2c = w2.astype(compute_dtype)
    w3c = w3p.astype(compute_dtype)
    b1c = b1.astype(jnp.float32)
    b2c = b2.astype(jnp.float32)
    b3c = b3p.astype(jnp.float32)

    # Batch tiling: TB multiple of 8, pad B up to a multiple of TB.
    TB = min(tile_b, _round_up(B, 8))
    B_pad = _round_up(B, TB)
    if B_pad != B:
        x = jnp.pad(x, ((0, B_pad - B), (0, 0)))
    grid = (B_pad // TB,)

    const = lambda i: (0, 0)  # weights/biases: VMEM-resident, DMA'd once
    out = pl.pallas_call(
        rnn_agent_kernel,
        out_shape=jax.ShapeDtypeStruct((B_pad, OUT_WIDTH), jnp.float32),
        grid=grid,
        in_specs=[
            pl.BlockSpec((TB, F_in), lambda i: (i, 0)),   # inputs: tiled over batch
            pl.BlockSpec((F_in, H), const),               # w1
            pl.BlockSpec((1, H), const),                  # b1
            pl.BlockSpec((H, H), const),                  # w2
            pl.BlockSpec((1, H), const),                  # b2
            pl.BlockSpec((H, H), const),                  # w3 (padded)
            pl.BlockSpec((1, H), const),                  # b3 (padded)
        ],
        out_specs=pl.BlockSpec((TB, OUT_WIDTH), lambda i: (i, 0)),
        compiler_params=pltpu.CompilerParams(
            dimension_semantics=("parallel",)),
    )(x, w1c, b1c, w2c, b2c, w3c, b3c)

    h = out[:B, :H]
    q = out[:B, H:H + N_ACTIONS]
    return q, h


def init_params(key, input_shape):
    """Deterministic init mimicking nn.Linear shapes.
    PyTorch stores W as (out, in); we build (out, in) then transpose to (in, out)."""
    k1, k2, k3, k4, k5, k6 = jax.random.split(key, 6)

    def linear(kw, kb, fan_in, fan_out):
        bound = 1.0 / jnp.sqrt(fan_in)
        w = jax.random.uniform(kw, (fan_out, fan_in), jnp.float32, -bound, bound)
        b = jax.random.uniform(kb, (fan_out,), jnp.float32, -bound, bound)
        return w.T, b.reshape(1, fan_out)  # (in, out), (1, out)

    w1, b1 = linear(k1, k2, input_shape, HIDDEN_DIM)
    w2, b2 = linear(k3, k4, HIDDEN_DIM, HIDDEN_DIM)
    w3, b3 = linear(k5, k6, HIDDEN_DIM, N_ACTIONS)
    return (w1, b1, w2, b2, w3, b3)


def reference_forward(inputs, params, compute_dtype=jnp.bfloat16):
    """Same math as the kernel (bf16 operands, f32 accumulation/bias/ReLU)."""
    w1, b1, w2, b2, w3, b3 = params
    x = inputs.astype(compute_dtype)
    h1 = jnp.dot(x, w1.astype(compute_dtype),
                 preferred_element_type=jnp.float32) + b1
    h1 = jnp.maximum(h1, 0.0)
    h2 = jnp.dot(h1.astype(compute_dtype), w2.astype(compute_dtype),
                 preferred_element_type=jnp.float32) + b2
    h2 = jnp.maximum(h2, 0.0)
    q = jnp.dot(h2.astype(compute_dtype), w3.astype(compute_dtype),
                preferred_element_type=jnp.float32) + b3
    return q, h2


if __name__ == "__main__":
    key = jax.random.PRNGKey(0)
    k_in, k_p = jax.random.split(key)

    # Small but non-trivial: B=40 with TB=16 exercises the batch grid (3 steps)
    # and the pad-to-tile path.
    B = 40
    INPUT_SHAPE = 32
    inputs = jax.random.normal(k_in, (B, INPUT_SHAPE), jnp.float32)
    hidden_state = jnp.zeros((1, HIDDEN_DIM), jnp.float32)  # init_hidden()
    hidden_state = jnp.broadcast_to(hidden_state, (B, HIDDEN_DIM))

    params = init_params(k_p, INPUT_SHAPE)

    q, h = rnn_agent_forward(inputs, hidden_state, params, tile_b=16)
    q = jax.block_until_ready(q)
    h = jax.block_until_ready(h)

    q_ref, h_ref = reference_forward(inputs, params)
    assert q.shape == (B, N_ACTIONS) and h.shape == (B, HIDDEN_DIM)
    assert jnp.allclose(q, q_ref, atol=1e-2, rtol=1e-2), \
        f"q mismatch: max abs err {jnp.max(jnp.abs(q - q_ref))}"
    assert jnp.allclose(h, h_ref, atol=1e-2, rtol=1e-2), \
        f"h mismatch: max abs err {jnp.max(jnp.abs(h - h_ref))}"

    print("KERNEL_OK")
</pallas_src>

<mosaic_0001>
module attributes {stable_mosaic.version = 11 : i64} {
  func.func @rnn_agent_kernel(%arg0: i32, %arg1: memref<16x32xbf16, #tpu.memory_space<vmem>>, %arg2: memref<32x64xbf16, #tpu.memory_space<vmem>>, %arg3: memref<1x64xf32, #tpu.memory_space<vmem>>, %arg4: memref<64x64xbf16, #tpu.memory_space<vmem>>, %arg5: memref<1x64xf32, #tpu.memory_space<vmem>>, %arg6: memref<64x64xbf16, #tpu.memory_space<vmem>>, %arg7: memref<1x64xf32, #tpu.memory_space<vmem>>, %arg8: memref<16x128xf32, #tpu.memory_space<vmem>>) attributes {dimension_semantics = [#tpu.dimension_semantics<parallel>], iteration_bounds = array<i64: 3>, scalar_prefetch = 0 : i64, scratch_operands = 0 : i64, tpu.core_type = #tpu.core_type<tc>, window_params = [{transform_indices = @transform_0, window_bounds = array<i64: 16, 32>}, {pipeline_mode = #tpu.pipeline_mode<synchronous>, transform_indices = @transform_1, window_bounds = array<i64: 32, 64>}, {pipeline_mode = #tpu.pipeline_mode<synchronous>, transform_indices = @transform_2, window_bounds = array<i64: 1, 64>}, {pipeline_mode = #tpu.pipeline_mode<synchronous>, transform_indices = @transform_3, window_bounds = array<i64: 64, 64>}, {pipeline_mode = #tpu.pipeline_mode<synchronous>, transform_indices = @transform_4, window_bounds = array<i64: 1, 64>}, {pipeline_mode = #tpu.pipeline_mode<synchronous>, transform_indices = @transform_5, window_bounds = array<i64: 64, 64>}, {pipeline_mode = #tpu.pipeline_mode<synchronous>, transform_indices = @transform_6, window_bounds = array<i64: 1, 64>}, {transform_indices = @transform_7, window_bounds = array<i64: 16, 128>}]} {
    %c0 = arith.constant 0 : index
    %c0_0 = arith.constant 0 : index
    %0 = vector.load %arg3[%c0, %c0_0] : memref<1x64xf32, #tpu.memory_space<vmem>>, vector<1x64xf32>
    %c0_1 = arith.constant 0 : index
    %c0_2 = arith.constant 0 : index
    %1 = vector.load %arg5[%c0_1, %c0_2] : memref<1x64xf32, #tpu.memory_space<vmem>>, vector<1x64xf32>
    %c0_3 = arith.constant 0 : index
    %c0_4 = arith.constant 0 : index
    %2 = vector.load %arg7[%c0_3, %c0_4] : memref<1x64xf32, #tpu.memory_space<vmem>>, vector<1x64xf32>
    %c0_5 = arith.constant 0 : index
    %c0_6 = arith.constant 0 : index
    %3 = vector.load %arg1[%c0_5, %c0_6] : memref<16x32xbf16, #tpu.memory_space<vmem>>, vector<16x32xbf16>
    %c0_7 = arith.constant 0 : index
    %c0_8 = arith.constant 0 : index
    %4 = vector.load %arg2[%c0_7, %c0_8] : memref<32x64xbf16, #tpu.memory_space<vmem>>, vector<32x64xbf16>
    %cst = arith.constant dense<0.000000e+00> : vector<16x64xf32>
    %5 = tpu.matmul %3, %4, %cst {dimension_numbers = #tpu.dot_dimension_numbers<[1], [0], [0], [1], [0, 0, 1, 1], [], []>} : vector<16x32xbf16>, vector<32x64xbf16>, vector<16x64xf32> -> vector<16x64xf32>
    %6 = vector.broadcast %0 : vector<1x64xf32> to vector<16x64xf32>
    %7 = arith.addf %5, %6 : vector<16x64xf32>
    %cst_9 = arith.constant 0.000000e+00 : f32
    %8 = vector.broadcast %cst_9 : f32 to vector<16x64xf32>
    %9 = arith.maximumf %7, %8 : vector<16x64xf32>
    %10 = arith.truncf %9 : vector<16x64xf32> to vector<16x64xbf16>
    %c0_10 = arith.constant 0 : index
    %c0_11 = arith.constant 0 : index
    %11 = vector.load %arg4[%c0_10, %c0_11] : memref<64x64xbf16, #tpu.memory_space<vmem>>, vector<64x64xbf16>
    %cst_12 = arith.constant dense<0.000000e+00> : vector<16x64xf32>
    %12 = tpu.matmul %10, %11, %cst_12 {dimension_numbers = #tpu.dot_dimension_numbers<[1], [0], [0], [1], [0, 0, 1, 1], [], []>} : vector<16x64xbf16>, vector<64x64xbf16>, vector<16x64xf32> -> vector<16x64xf32>
    %13 = vector.broadcast %1 : vector<1x64xf32> to vector<16x64xf32>
    %14 = arith.addf %12, %13 : vector<16x64xf32>
    %cst_13 = arith.constant 0.000000e+00 : f32
    %15 = vector.broadcast %cst_13 : f32 to vector<16x64xf32>
    %16 = arith.maximumf %14, %15 : vector<16x64xf32>
    %17 = arith.truncf %16 : vector<16x64xf32> to vector<16x64xbf16>
    %c0_14 = arith.constant 0 : index
    %c0_15 = arith.constant 0 : index
    %18 = vector.load %arg6[%c0_14, %c0_15] : memref<64x64xbf16, #tpu.memory_space<vmem>>, vector<64x64xbf16>
    %cst_16 = arith.constant dense<0.000000e+00> : vector<16x64xf32>
    %19 = tpu.matmul %17, %18, %cst_16 {dimension_numbers = #tpu.dot_dimension_numbers<[1], [0], [0], [1], [0, 0, 1, 1], [], []>} : vector<16x64xbf16>, vector<64x64xbf16>, vector<16x64xf32> -> vector<16x64xf32>
    %20 = vector.broadcast %2 : vector<1x64xf32> to vector<16x64xf32>
    %21 = arith.addf %19, %20 : vector<16x64xf32>
    %22 = tpu.concatenate %16, %21 in 1 : vector<16x64xf32>, vector<16x64xf32> -> vector<16x128xf32>
    %c0_17 = arith.constant 0 : index
    %c0_18 = arith.constant 0 : index
    %23 = vector.load %arg8[%c0_17, %c0_18] : memref<16x128xf32, #tpu.memory_space<vmem>>, vector<16x128xf32>
    tpu.vector_store %arg8[%c0_17, %c0_18], %22 {strides = array<i32>} : memref<16x128xf32, #tpu.memory_space<vmem>>, vector<16x128xf32>,
    return
  }
  func.func @transform_0(%arg0: i32) -> (i32, i32) {
    %c0_i32 = arith.constant 0 : i32
    %c0_i32_0 = arith.constant 0 : i32
    return %arg0, %c0_i32 : i32, i32
  }
  func.func @transform_1(%arg0: i32) -> (i32, i32) {
    %c0_i32 = arith.constant 0 : i32
    %c0_i32_0 = arith.constant 0 : i32
    %c0_i32_1 = arith.constant 0 : i32
    return %c0_i32, %c0_i32_0 : i32, i32
  }
  func.func @transform_2(%arg0: i32) -> (i32, i32) {
    %c0_i32 = arith.constant 0 : i32
    %c0_i32_0 = arith.constant 0 : i32
    %c0_i32_1 = arith.constant 0 : i32
    return %c0_i32, %c0_i32_0 : i32, i32
  }
  func.func @transform_3(%arg0: i32) -> (i32, i32) {
    %c0_i32 = arith.constant 0 : i32
    %c0_i32_0 = arith.constant 0 : i32
    %c0_i32_1 = arith.constant 0 : i32
    return %c0_i32, %c0_i32_0 : i32, i32
  }
  func.func @transform_4(%arg0: i32) -> (i32, i32) {
    %c0_i32 = arith.constant 0 : i32
    %c0_i32_0 = arith.constant 0 : i32
    %c0_i32_1 = arith.constant 0 : i32
    return %c0_i32, %c0_i32_0 : i32, i32
  }
  func.func @transform_5(%arg0: i32) -> (i32, i32) {
    %c0_i32 = arith.constant 0 : i32
    %c0_i32_0 = arith.constant 0 : i32
    %c0_i32_1 = arith.constant 0 : i32
    return %c0_i32, %c0_i32_0 : i32, i32
  }
  func.func @transform_6(%arg0: i32) -> (i32, i32) {
    %c0_i32 = arith.constant 0 : i32
    %c0_i32_0 = arith.constant 0 : i32
    %c0_i32_1 = arith.constant 0 : i32
    return %c0_i32, %c0_i32_0 : i32, i32
  }
  func.func @transform_7(%arg0: i32) -> (i32, i32) {
    %c0_i32 = arith.constant 0 : i32
    %c0_i32_0 = arith.constant 0 : i32
    return %arg0, %c0_i32 : i32, i32
  }
}

</mosaic_0001>

<llo_original>
// kernel: tpu_custom_call.1
$region0: #{tpu_custom_call.1}
  #allocation0 [shape = 'u32[]', space=smem, size = 0x4, offset = 0x4, fixed_abs, tag = 'smem constant byte address 0x4 - core index']
  #allocation1 [shape = 'u32[144,128]{1,0:T(1,128)}', space=vmem, size = 0x12000, scoped, tag = 'internal scratch']
  %s0 = inlined_call_operand.vmem [shape: bf16[48,32], index: 0, kind: input, shape index: {}]
  %s1 = inlined_call_operand.hbm [shape: bf16[32,64], index: 1, kind: input, shape index: {}]
  %s2 = inlined_call_operand.vmem [shape: f32[1,64], index: 2, kind: input, shape index: {}]
  %s3 = inlined_call_operand.vmem [shape: bf16[64,64], index: 3, kind: input, shape index: {}]
  %s4 = inlined_call_operand.vmem [shape: f32[1,64], index: 4, kind: input, shape index: {}]
  %s5 = inlined_call_operand.hbm [shape: bf16[64,64], index: 5, kind: input, shape index: {}]
  %s6 = inlined_call_operand.vmem [shape: f32[1,64], index: 6, kind: input, shape index: {}]
  %s7 = inlined_call_operand.hbm [shape: f32[48,128], index: 7, kind: output, shape index: {}]
  %s8 = sld [smem:[#allocation0]]
  $region69: #{tpu_custom_call.1} parent=0
    _
  %s10 = ssub.s32 1, %s8
  %s11 = scalar_select 0, %s10, %s8
  $region1: #{tpu_custom_call.1} parent=0
    #allocation2 [shape = 'u8[8192]{0}', space=vmem, size = 0x2000, scoped, tag = 'input window, operand 1, single buffered']
    #allocation3 [shape = 's32[2]{0}', space=sflag, size = 0x8, scoped, tag = 'scoped memory for tpu_custom_call.1']
    #allocation4 [shape = 's32[2]{0}', space=sflag, size = 0x8, scoped, tag = 'scoped memory for tpu_custom_call.1']
    #allocation5 [shape = 'u8[16384]{0}', space=vmem, size = 0x4000, scoped, tag = 'input window, operand 5, single buffered']
    #allocation6 [shape = 's32[1]{0}', space=sflag, size = 0x4, scoped, tag = 'scoped memory for tpu_custom_call.1']
    #allocation7 [shape = 'u8[16384]{0}', space=vmem, size = 0x4000, scoped, tag = 'output window, operand 0']
    %12 = vsyncpa [#allocation3], 0
    %13 = vsyncpa [#allocation6], 0
    %14 = vsyncpa [#allocation4], 0
    %s15 = scalar_lea.sflag [#allocation4], 1
    %16 = vsyncpa %s15, 0
    loop: start=0, step=1, limit=5
    $region2: #{tpu_custom_call.1} parent=1 // loop_pre_header
      _
    $region3: #{tpu_custom_call.1} parent=1 // loop_header
      %s18 = sphi 0, %s22
      %p19 = scmp.ge.s32.totalorder %s18, 5
      %s28 = sphi 0, %s30
      %s31 = sphi 0, %s28
      %s32 = sphi 0, %s31
      %s48 = sphi 0, %s32
      %s52 = sphi 0, %s52
      %s54 = sphi 0, %s52
      %s55 = sphi 0, %s54
      %s69 = sphi 0, %s55
      %s73 = sphi 0, %s73
      %s75 = sphi 0, %s73
      %s76 = sphi 0, %s75
      %s90 = sphi 0, %s76
      %s94 = sphi 0, %s94
      %s96 = sphi 0, %s94
      %s97 = sphi 0, %s96
      %s111 = sphi 0, %s97
      %s115 = sphi 0, %s115
      %s117 = sphi 0, %s115
      %s118 = sphi 0, %s117
      %s132 = sphi 0, %s118
      %s136 = sphi 0, %s136
      %s138 = sphi 0, %s136
      %s139 = sphi 0, %s138
      %s153 = sphi 0, %s139
      %s157 = sphi 0, %s157
      %s159 = sphi 0, %s157
      %s160 = sphi 0, %s159
      %s174 = sphi 0, %s160
      %s180 = sphi 0, %s182
      %s183 = sphi 0, %s180
      %s184 = sphi 0, %s183
      %s200 = sphi 0, %s184
    $region4: #{tpu_custom_call.1} parent=1 // loop_header_branch
      %21 = sbr.rel (%p19) target = $region8
    $region5: #{tpu_custom_call.1} parent=1 // loop_body
      %s23 = ssub.s32 %s18, 1
      %s24 = ssub.s32 %s18, 2
      %s25 = sadd.s32 %s18, 1
      %s26 = ssub.s32 %s18, %s25
      %p27 = scmp.eq.s32.totalorder %s26, 0
      %s29 = sadd.s32 %s28, 1
      %s30 = scalar_select %p27, %s28, %s29
      %p33 = pneg %p27
      %p34 = scmp.eq.s32.totalorder %s18, 2
      %p35 = por %p33, %p34
      %p36 = scmp.ne.s32.totalorder %s28, %s31
      %p37 = scmp.eq.s32.totalorder %s18, 0
      %p38 = por %p36, %p37
      %p39 = scmp.ne.s32.totalorder %s28, %s31
      %p40 = scmp.eq.s32.totalorder %s23, 2
      %p41 = por %p39, %p40
      %p42 = scmp.ne.s32.totalorder %s31, %s32
      %p43 = scmp.eq.s32.totalorder %s23, 0
      %p44 = por %p42, %p43
      %p45 = scmp.ne.s32.totalorder %s31, %s32
      %p46 = scmp.eq.s32.totalorder %s24, 2
      %p47 = por %p45, %p46
      %p49 = scmp.ne.s32.totalorder %s32, %s48
      %p50 = scmp.eq.s32.totalorder %s24, 0
      %p51 = por %p49, %p50
      %s53 = sadd.s32 %s52, 1
      %p56 = scmp.eq.s32.totalorder %s18, 2
      %p57 = scmp.ne.s32.totalorder %s52, %s54
      %p58 = scmp.eq.s32.totalorder %s18, 0
      %p59 = por %p57, %p58
      %p60 = scmp.ne.s32.totalorder %s52, %s54
      %p61 = scmp.eq.s32.totalorder %s23, 2
      %p62 = por %p60, %p61
      %p63 = scmp.ne.s32.totalorder %s54, %s55
      %p64 = scmp.eq.s32.totalorder %s23, 0
      %p65 = por %p63, %p64
      %p66 = scmp.ne.s32.totalorder %s54, %s55
      %p67 = scmp.eq.s32.totalorder %s24, 2
      %p68 = por %p66, %p67
      %p70 = scmp.ne.s32.totalorder %s55, %s69
      %p71 = scmp.eq.s32.totalorder %s24, 0
      %p72 = por %p70, %p71
      %s74 = sadd.s32 %s73, 1
      %p77 = scmp.eq.s32.totalorder %s18, 2
      %p78 = scmp.ne.s32.totalorder %s73, %s75
      %p79 = scmp.eq.s32.totalorder %s18, 0
      %p80 = por %p78, %p79
      %p81 = scmp.ne.s32.totalorder %s73, %s75
      %p82 = scmp.eq.s32.totalorder %s23, 2
      %p83 = por %p81, %p82
      %p84 = scmp.ne.s32.totalorder %s75, %s76
      %p85 = scmp.eq.s32.totalorder %s23, 0
      %p86 = por %p84, %p85
      %p87 = scmp.ne.s32.totalorder %s75, %s76
      %p88 = scmp.eq.s32.totalorder %s24, 2
      %p89 = por %p87, %p88
      %p91 = scmp.ne.s32.totalorder %s76, %s90
      %p92 = scmp.eq.s32.totalorder %s24, 0
      %p93 = por %p91, %p92
      %s95 = sadd.s32 %s94, 1
      %p98 = scmp.eq.s32.totalorder %s18, 2
      %p99 = scmp.ne.s32.totalorder %s94, %s96
      %p100 = scmp.eq.s32.totalorder %s18, 0
      %p101 = por %p99, %p100
      %p102 = scmp.ne.s32.totalorder %s94, %s96
      %p103 = scmp.eq.s32.totalorder %s23, 2
      %p104 = por %p102, %p103
      %p105 = scmp.ne.s32.totalorder %s96, %s97
      %p106 = scmp.eq.s32.totalorder %s23, 0
      %p107 = por %p105, %p106
      %p108 = scmp.ne.s32.totalorder %s96, %s97
      %p109 = scmp.eq.s32.totalorder %s24, 2
      %p110 = por %p108, %p109
      %p112 = scmp.ne.s32.totalorder %s97, %s111
      %p113 = scmp.eq.s32.totalorder %s24, 0
      %p114 = por %p112, %p113
      %s116 = sadd.s32 %s115, 1
      %p119 = scmp.eq.s32.totalorder %s18, 2
      %p120 = scmp.ne.s32.totalorder %s115, %s117
      %p121 = scmp.eq.s32.totalorder %s18, 0
      %p122 = por %p120, %p121
      %p123 = scmp.ne.s32.totalorder %s115, %s117
      %p124 = scmp.eq.s32.totalorder %s23, 2
      %p125 = por %p123, %p124
      %p126 = scmp.ne.s32.totalorder %s117, %s118
      %p127 = scmp.eq.s32.totalorder %s23, 0
      %p128 = por %p126, %p127
      %p129 = scmp.ne.s32.totalorder %s117, %s118
      %p130 = scmp.eq.s32.totalorder %s24, 2
      %p131 = por %p129, %p130
      %p133 = scmp.ne.s32.totalorder %s118, %s132
      %p134 = scmp.eq.s32.totalorder %s24, 0
      %p135 = por %p133, %p134
      %s137 = sadd.s32 %s136, 1
      %p140 = scmp.eq.s32.totalorder %s18, 2
      %p141 = scmp.ne.s32.totalorder %s136, %s138
      %p142 = scmp.eq.s32.totalorder %s18, 0
      %p143 = por %p141, %p142
      %p144 = scmp.ne.s32.totalorder %s136, %s138
      %p145 = scmp.eq.s32.totalorder %s23, 2
      %p146 = por %p144, %p145
      %p147 = scmp.ne.s32.totalorder %s138, %s139
      %p148 = scmp.eq.s32.totalorder %s23, 0
      %p149 = por %p147, %p148
      %p150 = scmp.ne.s32.totalorder %s138, %s139
      %p151 = scmp.eq.s32.totalorder %s24, 2
      %p152 = por %p150, %p151
      %p154 = scmp.ne.s32.totalorder %s139, %s153
      %p155 = scmp.eq.s32.totalorder %s24, 0
      %p156 = por %p154, %p155
      %s158 = sadd.s32 %s157, 1
      %p161 = scmp.eq.s32.totalorder %s18, 2
      %p162 = scmp.ne.s32.totalorder %s157, %s159
      %p163 = scmp.eq.s32.totalorder %s18, 0
      %p164 = por %p162, %p163
      %p165 = scmp.ne.s32.totalorder %s157, %s159
      %p166 = scmp.eq.s32.totalorder %s23, 2
      %p167 = por %p165, %p166
      %p168 = scmp.ne.s32.totalorder %s159, %s160
      %p169 = scmp.eq.s32.totalorder %s23, 0
      %p170 = por %p168, %p169
      %p171 = scmp.ne.s32.totalorder %s159, %s160
      %p172 = scmp.eq.s32.totalorder %s24, 2
      %p173 = por %p171, %p172
      %p175 = scmp.ne.s32.totalorder %s160, %s174
      %p176 = scmp.eq.s32.totalorder %s24, 0
      %p177 = por %p175, %p176
      %s178 = ssub.s32 %s18, %s25
      %p179 = scmp.eq.s32.totalorder %s178, 0
      %s181 = sadd.s32 %s180, 1
      %s182 = scalar_select %p179, %s180, %s181
      %p185 = pneg %p179
      %p186 = scmp.eq.s32.totalorder %s18, 2
      %p187 = por %p185, %p186
      %p188 = scmp.ne.s32.totalorder %s180, %s183
      %p189 = scmp.eq.s32.totalorder %s18, 0
      %p190 = por %p188, %p189
      %p191 = scmp.ne.s32.totalorder %s180, %s183
      %p192 = scmp.eq.s32.totalorder %s23, 2
      %p193 = por %p191, %p192
      %p194 = scmp.ne.s32.totalorder %s183, %s184
      %p195 = scmp.eq.s32.totalorder %s23, 0
      %p196 = por %p194, %p195
      %p197 = scmp.ne.s32.totalorder %s183, %s184
      %p198 = scmp.eq.s32.totalorder %s24, 2
      %p199 = por %p197, %p198
      %p201 = scmp.ne.s32.totalorder %s184, %s200
      %p202 = scmp.eq.s32.totalorder %s24, 0
      %p203 = por %p201, %p202
      %p204 = scmp.le.s32.totalorder 1, %s18
      %p205 = scmp.lt.s32.totalorder %s18, 4
      %p206 = pnand %p204, %p205
      %p207 = pneg %p206
      // Predicated region
      $region9: #{tpu_custom_call.1} parent=5 // pred_check
        _
      $region10: #{tpu_custom_call.1} parent=5 // pred_check_branch
        %209 = sbr.rel (%p206) target = $region12
      $region11: #{tpu_custom_call.1} parent=5 // pred_region
        %s210 = ssub.s32 %s18, 1
        // Predicated region
        $region13: #{tpu_custom_call.1} parent=11 // pred_check
          %p211 = pneg %p65
        $region14: #{tpu_custom_call.1} parent=11 // pred_check_branch
          %213 = sbr.rel (%p211) target = $region16
        $region15: #{tpu_custom_call.1} parent=11 // pred_region
          %s215 = ssub.s32 256, 256
          %216 = vsyncadd [#allocation3], %s215
          %s217 = sshll.u32 [#allocation2], 4
          %s218 = int_to_ptr.vmem [resolvable:$true] %s217
          %223 = dma.hbm_to_vmem [thread:$0]  %s1, 256, %s218, [#allocation3], 64, 64, 4
        $region16: #{tpu_custom_call.1} parent=11 // pred_fallthru
          _
        // Predicated region
        $region17: #{tpu_custom_call.1} parent=11 // pred_check
          %p224 = pneg %p86
        $region18: #{tpu_custom_call.1} parent=11 // pred_check_branch
          %226 = sbr.rel (%p224) target = $region20
        $region19: #{tpu_custom_call.1} parent=11 // pred_region
          _
        $region20: #{tpu_custom_call.1} parent=11 // pred_fallthru
          _
        // Predicated region
        $region21: #{tpu_custom_call.1} parent=11 // pred_check
          %p227 = pneg %p107
        $region22: #{tpu_custom_call.1} parent=11 // pred_check_branch
          %229 = sbr.rel (%p227) target = $region24
        $region23: #{tpu_custom_call.1} parent=11 // pred_region
          _
        $region24: #{tpu_custom_call.1} parent=11 // pred_fallthru
          _
        // Predicated region
        $region25: #{tpu_custom_call.1} parent=11 // pred_check
          %p230 = pneg %p128
        $region26: #{tpu_custom_call.1} parent=11 // pred_check_branch
          %232 = sbr.rel (%p230) target = $region28
        $region27: #{tpu_custom_call.1} parent=11 // pred_region
          _
        $region28: #{tpu_custom_call.1} parent=11 // pred_fallthru
          _
        // Predicated region
        $region29: #{tpu_custom_call.1} parent=11 // pred_check
          %p233 = pneg %p149
        $region30: #{tpu_custom_call.1} parent=11 // pred_check_branch
          %235 = sbr.rel (%p233) target = $region32
        $region31: #{tpu_custom_call.1} parent=11 // pred_region
          %s237 = ssub.s32 512, 512
          %238 = vsyncadd [#allocation6], %s237
          %s239 = sshll.u32 [#allocation5], 4
          %s240 = int_to_ptr.vmem [resolvable:$true] %s239
          %245 = dma.hbm_to_vmem [thread:$0]  %s5, 512, %s240, [#allocation6], 64, 64, 4
        $region32: #{tpu_custom_call.1} parent=11 // pred_fallthru
          _
        // Predicated region
        $region33: #{tpu_custom_call.1} parent=11 // pred_check
          %p246 = pneg %p170
        $region34: #{tpu_custom_call.1} parent=11 // pred_check_branch
          %248 = sbr.rel (%p246) target = $region36
        $region35: #{tpu_custom_call.1} parent=11 // pred_region
          _
        $region36: #{tpu_custom_call.1} parent=11 // pred_fallthru
          _
      $region12: #{tpu_custom_call.1} parent=5 // pred_fallthru
        _
      %p249 = scmp.lt.s32.totalorder %s18, 3
      // Predicated region
      $region37: #{tpu_custom_call.1} parent=5 // pred_check
        %p250 = pneg %p249
      $region38: #{tpu_custom_call.1} parent=5 // pred_check_branch
        %252 = sbr.rel (%p250) target = $region40
      $region39: #{tpu_custom_call.1} parent=5 // pred_region
        // Predicated region
        $region41: #{tpu_custom_call.1} parent=39 // pred_check
          %p253 = pneg %p38
        $region42: #{tpu_custom_call.1} parent=39 // pred_check_branch
          %255 = sbr.rel (%p253) target = $region44
        $region43: #{tpu_custom_call.1} parent=39 // pred_region
          %s256 = smul.u32 2, %s18
          %p257 = scmp.lt.s32.totalorder %s256, 5
          %s258 = scalar_select %p257, %s256, 5
          %s259 = smul.addr %s258, 4
          %s260 = scalar_lea.vmem %s0, %s259
          %s261 = smul.u32 2, %s18
        $region44: #{tpu_custom_call.1} parent=39 // pred_fallthru
          _
      $region40: #{tpu_custom_call.1} parent=5 // pred_fallthru
        _
      %p262 = scmp.le.s32.totalorder 1, %s18
      %p263 = scmp.lt.s32.totalorder %s18, 4
      %p264 = pnand %p262, %p263
      %p265 = pneg %p264
      // Predicated region
      $region45: #{tpu_custom_call.1} parent=5 // pred_check
        _
      $region46: #{tpu_custom_call.1} parent=5 // pred_check_branch
        %267 = sbr.rel (%p264) target = $region48
      $region47: #{tpu_custom_call.1} parent=5 // pred_region
        %s268 = ssub.s32 %s18, 1
        // Predicated region
        $region49: #{tpu_custom_call.1} parent=47 // pred_check
          %p269 = pneg %p65
        $region50: #{tpu_custom_call.1} parent=47 // pred_check_branch
          %271 = sbr.rel (%p269) target = $region52
        $region51: #{tpu_custom_call.1} parent=47 // pred_region
          %272 = dma.done [#allocation3], 256
        $region52: #{tpu_custom_call.1} parent=47 // pred_fallthru
          _
        // Predicated region
        $region53: #{tpu_custom_call.1} parent=47 // pred_check
          %p273 = pneg %p149
        $region54: #{tpu_custom_call.1} parent=47 // pred_check_branch
          %275 = sbr.rel (%p273) target = $region56
        $region55: #{tpu_custom_call.1} parent=47 // pred_region
          %276 = dma.done [#allocation6], 512
        $region56: #{tpu_custom_call.1} parent=47 // pred_fallthru
          _
        %s277 = smul.u32 2, %s23
        %p278 = scmp.lt.s32.totalorder %s277, 5
        %s279 = scalar_select %p278, %s277, 5
        %s280 = smul.addr %s279, 4
        %s281 = scalar_lea.vmem %s0, %s280
        %p282 = pneg %p44
        %p283 = pneg %p41
        %p284 = pneg %p65
        %p285 = pneg %p62
        %p286 = pneg %p86
        %p287 = pneg %p83
        %p288 = pneg %p107
        %p289 = pneg %p104
        %p290 = pneg %p128
        %p291 = pneg %p125
        %p292 = pneg %p149
        %p293 = pneg %p146
        %p294 = pneg %p170
        %p295 = pneg %p167
        %p296 = pneg %p196
        %p297 = pneg %p193
        %s298 = sand.u32 %s183, 1
        %s299 = scalar_lea.sflag [#allocation4], %s298
        %s300 = sand.u32 %s183, 1
        %s301 = smul.addr %s300, 16
        %s302 = scalar_lea.vmem [#allocation7], %s301
        %s303 = smul.u32 2, %s23
        %p304 = scmp.lt.s32.totalorder %s303, 5
        %s305 = scalar_select %p304, %s303, 5
        %s306 = smul.addr %s305, 4
        %s307 = scalar_lea.vmem %s0, %s306
        %s308 = smul.u32 2, %s23
        %s309 = smul.u32 2, %s23
        %v311 = vld [vmem:[%s2] sm:$0x1]
        %v312 = vld [vmem:[%s4] sm:$0x1]
        %v313 = vld [vmem:[%s6] sm:$0x1]
        %v314 = vld [vmem:[%s307] sm:$0xf]
        %v315 = vld [vmem:[%s307 + $0x4] sm:$0xf]
        %v316 = vld [vmem:[#allocation2] sm:$0xf]
        %v317 = vld [vmem:[#allocation2 + $0x4] sm:$0xf]
        %v318 = vld [vmem:[#allocation2 + $0x8] sm:$0xf]
        %v319 = vld [vmem:[#allocation2 + $0xc] sm:$0xf]
        %v321 = vlaneseq
        %v322 = vshrl.u32 %v321, 7
        %v323 = vsub.s32 0, %v322
        %v324 = vrot.slane %v311, %v323
        %v328 = vunpack.c.l.b16 %v314
        %v329 = vunpack.c.l.b16 %v315
        %v330 = vpack.c.b16 %v329, %v328
        %v335 = vunpack.c.l.b16 %v316
        %v336 = vunpack.c.l.b16 %v317
        %v337 = vunpack.c.l.b16 %v318
        %v338 = vunpack.c.l.b16 %v319
        %v339 = vpack.c.b16 %v336, %v335
        %v340 = vpack.c.b16 %v338, %v337
        %vm343 = vcmask 261120
        %v345 = vsel %vm343, %v330, 0
        %347 = vmatprep.subr.bf16.mxu0 0
        %348 = vmatpush1.bf16.msra.mxu0 0
        %349 = vmatprep.subr.bf16.mxu0 0
        %350 = vmatpush1.bf16.msra.mxu0 0
        %351 = vmatprep.subr.bf16.mxu0 0
        %352 = vmatpush1.bf16.msra.mxu0 0
        %353 = vmatprep.subr.bf16.mxu0 0
        %354 = vmatpush1.bf16.msra.mxu0 0
        %355 = vmatprep.subr.bf16.mxu0 0
        %356 = vmatpush1.bf16.msra.mxu0 0
        %357 = vmatprep.subr.bf16.mxu0 0
        %358 = vmatpush1.bf16.msra.mxu0 0
        %359 = vmatprep.subr.bf16.mxu0 0
        %360 = vmatpush1.bf16.msra.mxu0 %v340
        %361 = vmatprep.subr.bf16.mxu0 0
        %362 = vmatpush1.bf16.msra.mxu0 %v339
        %363 = vmatprep.subr.bf16.mxu0 0
        %364 = vmatpush2.bf16.msra.mxu0 0
        %365 = vmatprep.subr.bf16.mxu0 0
        %366 = vmatpush2.bf16.msra.mxu0 0
        %367 = vmatprep.subr.bf16.mxu0 0
        %368 = vmatpush2.bf16.msra.mxu0 0
        %369 = vmatprep.subr.bf16.mxu0 0
        %370 = vmatpush2.bf16.msra.mxu0 0
        %371 = vmatprep.subr.bf16.mxu0 0
        %372 = vmatpush2.bf16.msra.mxu0 0
        %373 = vmatprep.subr.bf16.mxu0 0
        %374 = vmatpush2.bf16.msra.mxu0 0
        %375 = vmatprep.subr.bf16.mxu0 0
        %376 = vmatpush2.bf16.msra.mxu0 0
        %377 = vmatprep.subr.bf16.mxu0 0
        %378 = vmatpush2.bf16.msra.mxu0 0
        %379 = vmatprep.mubr.bf16.mxu0 0
        %380 = vmatmul.mubr.bf16.gmra.mxu0 %v345
        %v381 = vpop.f32.mrf.mxu0
        %v382 = vadd.f32 %v324, %v381
        %v383 = vpop.f32.mrf.mxu0
        %v384 = vpop.f32.mrf.mxu0
        %v385 = vadd.f32 %v324, %v384
        %v386 = vpop.f32.mrf.mxu0
        %387 = vdwg.mxu0
        %v388 = vmax.f32 %v382, 0.0
        %v389 = vmax.f32 %v385, 0.0
        %v390 = vpack.c.bf16 %v389, %v388
        %v391 = vld [vmem:[%s3] sm:$0xf]
        %v392 = vld [vmem:[%s3 + $0x4] sm:$0xf]
        %v393 = vld [vmem:[%s3 + $0x8] sm:$0xf]
        %v394 = vld [vmem:[%s3 + $0xc] sm:$0xf]
        %v395 = vld [vmem:[%s3 + $0x10] sm:$0xf]
        %v396 = vld [vmem:[%s3 + $0x14] sm:$0xf]
        %v397 = vld [vmem:[%s3 + $0x18] sm:$0xf]
        %v398 = vld [vmem:[%s3 + $0x1c] sm:$0xf]
        %v400 = vlaneseq
        %v401 = vshrl.u32 %v400, 7
        %v402 = vsub.s32 0, %v401
        %v403 = vrot.slane %v312, %v402
        %v413 = vunpack.c.l.b16 %v391
        %v414 = vunpack.c.l.b16 %v392
        %v415 = vunpack.c.l.b16 %v393
        %v416 = vunpack.c.l.b16 %v394
        %v417 = vunpack.c.l.b16 %v395
        %v418 = vunpack.c.l.b16 %v396
        %v419 = vunpack.c.l.b16 %v397
        %v420 = vunpack.c.l.b16 %v398
        %v421 = vpack.c.b16 %v414, %v413
        %v422 = vpack.c.b16 %v416, %v415
        %v423 = vpack.c.b16 %v418, %v417
        %v424 = vpack.c.b16 %v420, %v419
        %vm429 = vcmask 523264
        %v431 = vsel %vm429, %v390, 0
        %433 = vmatprep.subr.bf16.mxu0 0
        %434 = vmatpush1.bf16.msra.mxu0 0
        %435 = vmatprep.subr.bf16.mxu0 0
        %436 = vmatpush1.bf16.msra.mxu0 0
        %437 = vmatprep.subr.bf16.mxu0 0
        %438 = vmatpush1.bf16.msra.mxu0 0
        %439 = vmatprep.subr.bf16.mxu0 0
        %440 = vmatpush1.bf16.msra.mxu0 0
        %441 = vmatprep.subr.bf16.mxu0 0
        %442 = vmatpush1.bf16.msra.mxu0 %v424
        %443 = vmatprep.subr.bf16.mxu0 0
        %444 = vmatpush1.bf16.msra.mxu0 %v423
        %445 = vmatprep.subr.bf16.mxu0 0
        %446 = vmatpush1.bf16.msra.mxu0 %v422
        %447 = vmatprep.subr.bf16.mxu0 0
        %448 = vmatpush1.bf16.msra.mxu0 %v421
        %449 = vmatprep.subr.bf16.mxu0 0
        %450 = vmatpush2.bf16.msra.mxu0 0
        %451 = vmatprep.subr.bf16.mxu0 0
        %452 = vmatpush2.bf16.msra.mxu0 0
        %453 = vmatprep.subr.bf16.mxu0 0
        %454 = vmatpush2.bf16.msra.mxu0 0
        %455 = vmatprep.subr.bf16.mxu0 0
        %456 = vmatpush2.bf16.msra.mxu0 0
        %457 = vmatprep.subr.bf16.mxu0 0
        %458 = vmatpush2.bf16.msra.mxu0 0
        %459 = vmatprep.subr.bf16.mxu0 0
        %460 = vmatpush2.bf16.msra.mxu0 0
        %461 = vmatprep.subr.bf16.mxu0 0
        %462 = vmatpush2.bf16.msra.mxu0 0
        %463 = vmatprep.subr.bf16.mxu0 0
        %464 = vmatpush2.bf16.msra.mxu0 0
        %465 = vmatprep.mubr.bf16.mxu0 0
        %466 = vmatmul.mubr.bf16.gmra.mxu0 %v431
        %v467 = vpop.f32.mrf.mxu0
        %v468 = vadd.f32 %v403, %v467
        %v469 = vpop.f32.mrf.mxu0
        %v470 = vpop.f32.mrf.mxu0
        %v471 = vadd.f32 %v403, %v470
        %v472 = vpop.f32.mrf.mxu0
        %473 = vdwg.mxu0
        %v474 = vmax.f32 %v468, 0.0
        %v475 = vmax.f32 %v471, 0.0
        %v476 = vpack.c.bf16 %v475, %v474
        %v477 = vld [vmem:[#allocation5] sm:$0xf]
        %v478 = vld [vmem:[#allocation5 + $0x4] sm:$0xf]
        %v479 = vld [vmem:[#allocation5 + $0x8] sm:$0xf]
        %v480 = vld [vmem:[#allocation5 + $0xc] sm:$0xf]
        %v481 = vld [vmem:[#allocation5 + $0x10] sm:$0xf]
        %v482 = vld [vmem:[#allocation5 + $0x14] sm:$0xf]
        %v483 = vld [vmem:[#allocation5 + $0x18] sm:$0xf]
        %v484 = vld [vmem:[#allocation5 + $0x1c] sm:$0xf]
        %v486 = vlaneseq
        %v487 = vshrl.u32 %v486, 7
        %v488 = vsub.s32 0, %v487
        %v489 = vrot.slane %v313, %v488
        %v499 = vunpack.c.l.b16 %v477
        %v500 = vunpack.c.l.b16 %v478
        %v501 = vunpack.c.l.b16 %v479
        %v502 = vunpack.c.l.b16 %v480
        %v503 = vunpack.c.l.b16 %v481
        %v504 = vunpack.c.l.b16 %v482
        %v505 = vunpack.c.l.b16 %v483
        %v506 = vunpack.c.l.b16 %v484
        %v507 = vpack.c.b16 %v500, %v499
        %v508 = vpack.c.b16 %v502, %v501
        %v509 = vpack.c.b16 %v504, %v503
        %v510 = vpack.c.b16 %v506, %v505
        %v516 = vsel %vm429, %v476, 0
        %518 = vmatprep.subr.bf16.mxu0 0
        %519 = vmatpush1.bf16.msra.mxu0 0
        %520 = vmatprep.subr.bf16.mxu0 0
        %521 = vmatpush1.bf16.msra.mxu0 0
        %522 = vmatprep.subr.bf16.mxu0 0
        %523 = vmatpush1.bf16.msra.mxu0 0
        %524 = vmatprep.subr.bf16.mxu0 0
        %525 = vmatpush1.bf16.msra.mxu0 0
        %526 = vmatprep.subr.bf16.mxu0 0
        %527 = vmatpush1.bf16.msra.mxu0 %v510
        %528 = vmatprep.subr.bf16.mxu0 0
        %529 = vmatpush1.bf16.msra.mxu0 %v509
        %530 = vmatprep.subr.bf16.mxu0 0
        %531 = vmatpush1.bf16.msra.mxu0 %v508
        %532 = vmatprep.subr.bf16.mxu0 0
        %533 = vmatpush1.bf16.msra.mxu0 %v507
        %534 = vmatprep.subr.bf16.mxu0 0
        %535 = vmatpush2.bf16.msra.mxu0 0
        %536 = vmatprep.subr.bf16.mxu0 0
        %537 = vmatpush2.bf16.msra.mxu0 0
        %538 = vmatprep.subr.bf16.mxu0 0
        %539 = vmatpush2.bf16.msra.mxu0 0
        %540 = vmatprep.subr.bf16.mxu0 0
        %541 = vmatpush2.bf16.msra.mxu0 0
        %542 = vmatprep.subr.bf16.mxu0 0
        %543 = vmatpush2.bf16.msra.mxu0 0
        %544 = vmatprep.subr.bf16.mxu0 0
        %545 = vmatpush2.bf16.msra.mxu0 0
        %546 = vmatprep.subr.bf16.mxu0 0
        %547 = vmatpush2.bf16.msra.mxu0 0
        %548 = vmatprep.subr.bf16.mxu0 0
        %549 = vmatpush2.bf16.msra.mxu0 0
        %550 = vmatprep.mubr.bf16.mxu0 0
        %551 = vmatmul.mubr.bf16.gmra.mxu0 %v516
        %v552 = vpop.f32.mrf.mxu0
        %v553 = vadd.f32 %v489, %v552
        %v554 = vpop.f32.mrf.mxu0
        %v555 = vpop.f32.mrf.mxu0
        %v556 = vadd.f32 %v489, %v555
        %v557 = vpop.f32.mrf.mxu0
        %558 = vdwg.mxu0
        %561 = vrot.lane.b32.xlu0 %v553, 64
        %v562 = vpop.permute.xlu0 %561
        %563 = vrot.lane.b32.xlu0 %v556, 64
        %v564 = vpop.permute.xlu0 %563
        %v567 = vsel %vm429, %v474, %v562
        %v568 = vsel %vm429, %v475, %v564
        %569 = vst [vmem:[%s302] sm:$0xff] %v567
        %570 = vst [vmem:[%s302 + $0x8] sm:$0xff] %v568
        %s571 = sand.u32 %s183, 1
        %s572 = scalar_lea.sflag [#allocation4], %s571
        %s573 = sand.u32 %s183, 1
        %s574 = smul.addr %s573, 16
        %s575 = scalar_lea.vmem [#allocation7], %s574
        // Predicated region
        $region57: #{tpu_custom_call.1} parent=47 // pred_check
          %p576 = pneg %p193
        $region58: #{tpu_custom_call.1} parent=47 // pred_check_branch
          %578 = sbr.rel (%p576) target = $region60
        $region59: #{tpu_custom_call.1} parent=47 // pred_region
          %s579 = smul.u32 2, %s23
          %s581 = ssub.s32 256, 256
          %582 = vsyncadd %s572, %s581
          %s583 = smul.addr %s579, 128
          %s584 = scalar_lea.hbm %s7, %s583
          %s585 = sshll.u32 %s575, 4
          %s586 = int_to_ptr.vmem [resolvable:$true] %s585
          %591 = dma.vmem_to_hbm [thread:$0]  %s586, 256, %s584, %s572, 128, 128, 8
        $region60: #{tpu_custom_call.1} parent=47 // pred_fallthru
          _
      $region48: #{tpu_custom_call.1} parent=5 // pred_fallthru
        _
      %p592 = scmp.le.s32.totalorder 2, %s18
      // Predicated region
      $region61: #{tpu_custom_call.1} parent=5 // pred_check
        %p593 = pneg %p592
      $region62: #{tpu_custom_call.1} parent=5 // pred_check_branch
        %595 = sbr.rel (%p593) target = $region64
      $region63: #{tpu_custom_call.1} parent=5 // pred_region
        %s596 = ssub.s32 %s18, 2
        // Predicated region
        $region65: #{tpu_custom_call.1} parent=63 // pred_check
          %p597 = pneg %p199
        $region66: #{tpu_custom_call.1} parent=63 // pred_check_branch
          %599 = sbr.rel (%p597) target = $region68
        $region67: #{tpu_custom_call.1} parent=63 // pred_region
          %s600 = sand.u32 %s184, 1
          %s601 = scalar_lea.sflag [#allocation4], %s600
          %s602 = sand.u32 %s184, 1
          %s603 = smul.addr %s602, 16
          %s604 = scalar_lea.vmem [#allocation7], %s603
          %605 = dma.done %s601, 256
        $region68: #{tpu_custom_call.1} parent=63 // pred_fallthru
          _
      $region64: #{tpu_custom_call.1} parent=5 // pred_fallthru
        _
    $region6: #{tpu_custom_call.1} parent=1 // loop_footer
      %s22 = sadd.s32 1, %s18
    $region7: #{tpu_custom_call.1} parent=1 // loop_footer_branch
      %17 = sbr.rel target = $region3
    $region8: #{tpu_custom_call.1} parent=1 // loop_exit
      _
    %606 = vsyncpa [#allocation3], 1
    %s607 = scalar_lea.sflag [#allocation3], 1
    %608 = vsyncpa %s607, 1
    %609 = vsyncpa [#allocation6], 1
    %610 = vsyncpa [#allocation4], 1
    %s611 = scalar_lea.sflag [#allocation4], 1
    %612 = vsyncpa %s611, 1

</llo_original>
